<compile_context>
chip_gen: v7x
topology: tpu7x:2x2x1
jax: 0.10.0
libtpu: 0.0.40
codegen_flags: <defaults>
</compile_context>

<pallas_src>
import functools
import math

import jax
import jax.numpy as jnp
from jax.experimental import pallas as pl
from jax.experimental.pallas import tpu as pltpu


def make_fourier_weight(window_size: int) -> jnp.ndarray:
    """Replicates FIC.init(): cos/sin Fourier basis, shape (2*k, window_size)."""
    k = window_size // 2
    j = jnp.arange(window_size, dtype=jnp.float32)
    basis = (2.0 * math.pi / window_size) * j            # (W,)
    rows = []
    for i in range(2 * k):
        f = float(i // 2 + 1)
        if i % 2 == 0:
            rows.append(jnp.cos(f * basis))
        else:
            rows.append(jnp.sin(-f * basis))
    return jnp.stack(rows, axis=0)                        # (2k, W)


def _fic_kernel(x_ref, w_ref, o_ref, *, window_size, stride, l_out, n_chunks):
    # x_ref: (TILE_BC, stride, n_blocks)  phase-split input, x_ph[b,c,m]=x[b,m*s+c]
    # w_ref: (W, 2k, 1)                   tap-major weights, channels on sublanes
    # o_ref: (TILE_BC, 2k, l_out)         PyTorch conv-output layout
    acc = None
    # Unrolled over the W taps only (small); each tap is a vectorized
    # broadcast-FMA over the full (TILE_BC, 2k, L_out) output tile on the VPU.
    for j in range(n_chunks):
        chunk_len = min(stride, window_size - j * stride)
        for c in range(chunk_len):
            tap = j * stride + c
            xs = x_ref[:, c, j:j + l_out]            # (TILE_BC, l_out)
            wv = w_ref[tap]                          # (2k, 1)
            term = wv[None, :, :] * xs[:, None, :]   # (TILE_BC, 2k, l_out)
            acc = term if acc is None else acc + term
    o_ref[...] = acc.astype(o_ref.dtype)


def _round_up(a: int, m: int) -> int:
    return (a + m - 1) // m * m


def fic_forward(x: jnp.ndarray, window_size: int, stride: int) -> jnp.ndarray:
    """x: (B, C, L) float32 -> (B, C, 2*(window_size//2), L_out)."""
    B, C, L = x.shape
    k = window_size // 2
    out_ch = 2 * k
    l_out = (L - window_size) // stride + 1
    assert l_out >= 1, "signal too short for the given window/stride"

    n_chunks = -(-window_size // stride)              # ceil(W / stride)
    n_blocks = l_out + n_chunks - 1
    l_need = n_blocks * stride                        # samples the windows touch

    BC = B * C
    x2d = x.reshape(BC, L).astype(jnp.float32)
    if l_need <= L:
        x2d = x2d[:, :l_need]
    else:
        x2d = jnp.pad(x2d, ((0, 0), (0, l_need - L)))

    # Phase-split the (small) input side: x_ph[b, c, m] = x[b, m*stride + c].
    x_ph = x2d.reshape(BC, n_blocks, stride).transpose(0, 2, 1)   # (BC, s, n_blocks)

    # Fourier filter bank, tap-major with channels on the sublane axis.
    weight = make_fourier_weight(window_size)                     # (2k, W)
    w_taps = weight.T[:, :, None]                                 # (W, 2k, 1)

    # ---- choose a BC tile that fits comfortably in scoped VMEM on all chips ----
    def vmem_bytes(tile_bc):
        x_tile = tile_bc * _round_up(stride, 8) * _round_up(n_blocks, 128) * 4
        o_tile = tile_bc * _round_up(out_ch, 8) * _round_up(l_out, 128) * 4
        return 2 * (x_tile + o_tile)                  # double-buffered in + out

    tile_bc = min(512, _round_up(BC, 8))
    while tile_bc > 8 and vmem_bytes(tile_bc) > 10 * 1024 * 1024:
        tile_bc = max(8, (tile_bc // 16) * 8)         # halve, keep multiple of 8
    bc_pad = _round_up(BC, tile_bc)
    if bc_pad != BC:
        x_ph = jnp.pad(x_ph, ((0, bc_pad - BC), (0, 0), (0, 0)))
    num_tiles = bc_pad // tile_bc

    kernel = functools.partial(
        _fic_kernel,
        window_size=window_size, stride=stride, l_out=l_out, n_chunks=n_chunks,
    )

    cost = pl.CostEstimate(
        flops=2 * BC * out_ch * l_out * window_size,
        transcendentals=0,
        bytes_accessed=4 * (BC * L + out_ch * window_size + BC * out_ch * l_out),
    )

    out = pl.pallas_call(
        kernel,
        out_shape=jax.ShapeDtypeStruct((bc_pad, out_ch, l_out), jnp.float32),
        grid=(num_tiles,),
        in_specs=[
            pl.BlockSpec((tile_bc, stride, n_blocks), lambda i: (i, 0, 0)),
            pl.BlockSpec((window_size, out_ch, 1), lambda i: (0, 0, 0)),  # resident
        ],
        out_specs=pl.BlockSpec((tile_bc, out_ch, l_out), lambda i: (i, 0, 0)),
        compiler_params=pltpu.CompilerParams(dimension_semantics=("parallel",)),
        cost_estimate=cost,
    )(x_ph, w_taps)

    return out[:BC].reshape(B, C, out_ch, l_out)


if __name__ == "__main__":
    # Small, deterministic example consistent with the module's forward.
    B, C, L = 2, 4, 16
    window_size, stride = 8, 4          # k = 4, out_channels = 8, L_out = 3

    key = jax.random.PRNGKey(0)
    x = jax.random.normal(key, (B, C, L), dtype=jnp.float32)

    out = fic_forward(x, window_size, stride)
    jax.block_until_ready(out)

    # Pure-JAX f32 reference (same math, exact VPU arithmetic).
    w = make_fourier_weight(window_size)
    l_out = (L - window_size) // stride + 1
    x2d = x.reshape(B * C, L)
    wins = jnp.stack(
        [x2d[:, t * stride: t * stride + window_size] for t in range(l_out)],
        axis=1,
    )                                                   # (BC, L_out, W)
    ref = (wins[:, None, :, :] * w[None, :, None, :]).sum(-1)   # (BC, 2k, L_out)
    ref = ref.reshape(B, C, 2 * (window_size // 2), l_out)

    assert out.shape == (B, C, 2 * (window_size // 2), l_out)
    assert jnp.allclose(out, ref, atol=1e-5, rtol=1e-5)

    print("KERNEL_OK")
</pallas_src>

<mosaic_0001>
module attributes {stable_mosaic.version = 11 : i64} {
  func.func @_fic_kernel(%arg0: i32, %arg1: memref<8x4x4xf32, #tpu.memory_space<vmem>>, %arg2: memref<8x8x1xf32, #tpu.memory_space<vmem>>, %arg3: memref<8x8x3xf32, #tpu.memory_space<vmem>>) attributes {dimension_semantics = [#tpu.dimension_semantics<parallel>], iteration_bounds = array<i64: 1>, scalar_prefetch = 0 : i64, scratch_operands = 0 : i64, tpu.core_type = #tpu.core_type<tc>, window_params = [{transform_indices = @transform_0, window_bounds = array<i64: 8, 4, 4>}, {pipeline_mode = #tpu.pipeline_mode<synchronous>, transform_indices = @transform_1, window_bounds = array<i64: 8, 8, 1>}, {transform_indices = @transform_2, window_bounds = array<i64: 8, 8, 3>}]} {
    %c0 = arith.constant 0 : index
    %c0_0 = arith.constant 0 : index
    %c0_1 = arith.constant 0 : index
    %0 = vector.load %arg1[%c0, %c0_0, %c0_1] : memref<8x4x4xf32, #tpu.memory_space<vmem>>, vector<8x1x3xf32>
    %1 = vector.shape_cast %0 : vector<8x1x3xf32> to vector<8x3xf32>
    %c0_2 = arith.constant 0 : index
    %c0_3 = arith.constant 0 : index
    %c0_4 = arith.constant 0 : index
    %2 = vector.load %arg2[%c0_2, %c0_3, %c0_4] : memref<8x8x1xf32, #tpu.memory_space<vmem>>, vector<1x8x1xf32>
    %3 = vector.shape_cast %2 : vector<1x8x1xf32> to vector<8x1xf32>
    %4 = vector.shape_cast %3 : vector<8x1xf32> to vector<1x8x1xf32>
    %5 = vector.shape_cast %1 : vector<8x3xf32> to vector<8x1x3xf32>
    %6 = vector.broadcast %4 : vector<1x8x1xf32> to vector<8x8x3xf32>
    %7 = vector.broadcast %5 : vector<8x1x3xf32> to vector<8x8x3xf32>
    %8 = arith.mulf %6, %7 : vector<8x8x3xf32>
    %c0_5 = arith.constant 0 : index
    %c1 = arith.constant 1 : index
    %c0_6 = arith.constant 0 : index
    %9 = vector.load %arg1[%c0_5, %c1, %c0_6] : memref<8x4x4xf32, #tpu.memory_space<vmem>>, vector<8x1x3xf32>
    %10 = vector.shape_cast %9 : vector<8x1x3xf32> to vector<8x3xf32>
    %c1_7 = arith.constant 1 : index
    %c0_8 = arith.constant 0 : index
    %c0_9 = arith.constant 0 : index
    %11 = vector.load %arg2[%c1_7, %c0_8, %c0_9] : memref<8x8x1xf32, #tpu.memory_space<vmem>>, vector<1x8x1xf32>
    %12 = vector.shape_cast %11 : vector<1x8x1xf32> to vector<8x1xf32>
    %13 = vector.shape_cast %12 : vector<8x1xf32> to vector<1x8x1xf32>
    %14 = vector.shape_cast %10 : vector<8x3xf32> to vector<8x1x3xf32>
    %15 = vector.broadcast %13 : vector<1x8x1xf32> to vector<8x8x3xf32>
    %16 = vector.broadcast %14 : vector<8x1x3xf32> to vector<8x8x3xf32>
    %17 = arith.mulf %15, %16 : vector<8x8x3xf32>
    %18 = arith.addf %8, %17 : vector<8x8x3xf32>
    %c0_10 = arith.constant 0 : index
    %c2 = arith.constant 2 : index
    %c0_11 = arith.constant 0 : index
    %19 = vector.load %arg1[%c0_10, %c2, %c0_11] : memref<8x4x4xf32, #tpu.memory_space<vmem>>, vector<8x1x3xf32>
    %20 = vector.shape_cast %19 : vector<8x1x3xf32> to vector<8x3xf32>
    %c2_12 = arith.constant 2 : index
    %c0_13 = arith.constant 0 : index
    %c0_14 = arith.constant 0 : index
    %21 = vector.load %arg2[%c2_12, %c0_13, %c0_14] : memref<8x8x1xf32, #tpu.memory_space<vmem>>, vector<1x8x1xf32>
    %22 = vector.shape_cast %21 : vector<1x8x1xf32> to vector<8x1xf32>
    %23 = vector.shape_cast %22 : vector<8x1xf32> to vector<1x8x1xf32>
    %24 = vector.shape_cast %20 : vector<8x3xf32> to vector<8x1x3xf32>
    %25 = vector.broadcast %23 : vector<1x8x1xf32> to vector<8x8x3xf32>
    %26 = vector.broadcast %24 : vector<8x1x3xf32> to vector<8x8x3xf32>
    %27 = arith.mulf %25, %26 : vector<8x8x3xf32>
    %28 = arith.addf %18, %27 : vector<8x8x3xf32>
    %c0_15 = arith.constant 0 : index
    %c3 = arith.constant 3 : index
    %c0_16 = arith.constant 0 : index
    %29 = vector.load %arg1[%c0_15, %c3, %c0_16] : memref<8x4x4xf32, #tpu.memory_space<vmem>>, vector<8x1x3xf32>
    %30 = vector.shape_cast %29 : vector<8x1x3xf32> to vector<8x3xf32>
    %c3_17 = arith.constant 3 : index
    %c0_18 = arith.constant 0 : index
    %c0_19 = arith.constant 0 : index
    %31 = vector.load %arg2[%c3_17, %c0_18, %c0_19] : memref<8x8x1xf32, #tpu.memory_space<vmem>>, vector<1x8x1xf32>
    %32 = vector.shape_cast %31 : vector<1x8x1xf32> to vector<8x1xf32>
    %33 = vector.shape_cast %32 : vector<8x1xf32> to vector<1x8x1xf32>
    %34 = vector.shape_cast %30 : vector<8x3xf32> to vector<8x1x3xf32>
    %35 = vector.broadcast %33 : vector<1x8x1xf32> to vector<8x8x3xf32>
    %36 = vector.broadcast %34 : vector<8x1x3xf32> to vector<8x8x3xf32>
    %37 = arith.mulf %35, %36 : vector<8x8x3xf32>
    %38 = arith.addf %28, %37 : vector<8x8x3xf32>
    %c0_20 = arith.constant 0 : index
    %c0_21 = arith.constant 0 : index
    %c1_22 = arith.constant 1 : index
    %39 = vector.load %arg1[%c0_20, %c0_21, %c1_22] : memref<8x4x4xf32, #tpu.memory_space<vmem>>, vector<8x1x3xf32>
    %40 = vector.shape_cast %39 : vector<8x1x3xf32> to vector<8x3xf32>
    %c4 = arith.constant 4 : index
    %c0_23 = arith.constant 0 : index
    %c0_24 = arith.constant 0 : index
    %41 = vector.load %arg2[%c4, %c0_23, %c0_24] : memref<8x8x1xf32, #tpu.memory_space<vmem>>, vector<1x8x1xf32>
    %42 = vector.shape_cast %41 : vector<1x8x1xf32> to vector<8x1xf32>
    %43 = vector.shape_cast %42 : vector<8x1xf32> to vector<1x8x1xf32>
    %44 = vector.shape_cast %40 : vector<8x3xf32> to vector<8x1x3xf32>
    %45 = vector.broadcast %43 : vector<1x8x1xf32> to vector<8x8x3xf32>
    %46 = vector.broadcast %44 : vector<8x1x3xf32> to vector<8x8x3xf32>
    %47 = arith.mulf %45, %46 : vector<8x8x3xf32>
    %48 = arith.addf %38, %47 : vector<8x8x3xf32>
    %c0_25 = arith.constant 0 : index
    %c1_26 = arith.constant 1 : index
    %c1_27 = arith.constant 1 : index
    %49 = vector.load %arg1[%c0_25, %c1_26, %c1_27] : memref<8x4x4xf32, #tpu.memory_space<vmem>>, vector<8x1x3xf32>
    %50 = vector.shape_cast %49 : vector<8x1x3xf32> to vector<8x3xf32>
    %c5 = arith.constant 5 : index
    %c0_28 = arith.constant 0 : index
    %c0_29 = arith.constant 0 : index
    %51 = vector.load %arg2[%c5, %c0_28, %c0_29] : memref<8x8x1xf32, #tpu.memory_space<vmem>>, vector<1x8x1xf32>
    %52 = vector.shape_cast %51 : vector<1x8x1xf32> to vector<8x1xf32>
    %53 = vector.shape_cast %52 : vector<8x1xf32> to vector<1x8x1xf32>
    %54 = vector.shape_cast %50 : vector<8x3xf32> to vector<8x1x3xf32>
    %55 = vector.broadcast %53 : vector<1x8x1xf32> to vector<8x8x3xf32>
    %56 = vector.broadcast %54 : vector<8x1x3xf32> to vector<8x8x3xf32>
    %57 = arith.mulf %55, %56 : vector<8x8x3xf32>
    %58 = arith.addf %48, %57 : vector<8x8x3xf32>
    %c0_30 = arith.constant 0 : index
    %c2_31 = arith.constant 2 : index
    %c1_32 = arith.constant 1 : index
    %59 = vector.load %arg1[%c0_30, %c2_31, %c1_32] : memref<8x4x4xf32, #tpu.memory_space<vmem>>, vector<8x1x3xf32>
    %60 = vector.shape_cast %59 : vector<8x1x3xf32> to vector<8x3xf32>
    %c6 = arith.constant 6 : index
    %c0_33 = arith.constant 0 : index
    %c0_34 = arith.constant 0 : index
    %61 = vector.load %arg2[%c6, %c0_33, %c0_34] : memref<8x8x1xf32, #tpu.memory_space<vmem>>, vector<1x8x1xf32>
    %62 = vector.shape_cast %61 : vector<1x8x1xf32> to vector<8x1xf32>
    %63 = vector.shape_cast %62 : vector<8x1xf32> to vector<1x8x1xf32>
    %64 = vector.shape_cast %60 : vector<8x3xf32> to vector<8x1x3xf32>
    %65 = vector.broadcast %63 : vector<1x8x1xf32> to vector<8x8x3xf32>
    %66 = vector.broadcast %64 : vector<8x1x3xf32> to vector<8x8x3xf32>
    %67 = arith.mulf %65, %66 : vector<8x8x3xf32>
    %68 = arith.addf %58, %67 : vector<8x8x3xf32>
    %c0_35 = arith.constant 0 : index
    %c3_36 = arith.constant 3 : index
    %c1_37 = arith.constant 1 : index
    %69 = vector.load %arg1[%c0_35, %c3_36, %c1_37] : memref<8x4x4xf32, #tpu.memory_space<vmem>>, vector<8x1x3xf32>
    %70 = vector.shape_cast %69 : vector<8x1x3xf32> to vector<8x3xf32>
    %c7 = arith.constant 7 : index
    %c0_38 = arith.constant 0 : index
    %c0_39 = arith.constant 0 : index
    %71 = vector.load %arg2[%c7, %c0_38, %c0_39] : memref<8x8x1xf32, #tpu.memory_space<vmem>>, vector<1x8x1xf32>
    %72 = vector.shape_cast %71 : vector<1x8x1xf32> to vector<8x1xf32>
    %73 = vector.shape_cast %72 : vector<8x1xf32> to vector<1x8x1xf32>
    %74 = vector.shape_cast %70 : vector<8x3xf32> to vector<8x1x3xf32>
    %75 = vector.broadcast %73 : vector<1x8x1xf32> to vector<8x8x3xf32>
    %76 = vector.broadcast %74 : vector<8x1x3xf32> to vector<8x8x3xf32>
    %77 = arith.mulf %75, %76 : vector<8x8x3xf32>
    %78 = arith.addf %68, %77 : vector<8x8x3xf32>
    %c0_40 = arith.constant 0 : index
    %c0_41 = arith.constant 0 : index
    %c0_42 = arith.constant 0 : index
    %79 = vector.load %arg3[%c0_40, %c0_41, %c0_42] : memref<8x8x3xf32, #tpu.memory_space<vmem>>, vector<8x8x3xf32>
    tpu.vector_store %arg3[%c0_40, %c0_41, %c0_42], %78 {strides = array<i32>} : memref<8x8x3xf32, #tpu.memory_space<vmem>>, vector<8x8x3xf32>,
    return
  }
  func.func @transform_0(%arg0: i32) -> (i32, i32, i32) {
    %c0_i32 = arith.constant 0 : i32
    %c0_i32_0 = arith.constant 0 : i32
    %c0_i32_1 = arith.constant 0 : i32
    return %arg0, %c0_i32, %c0_i32_0 : i32, i32, i32
  }
  func.func @transform_1(%arg0: i32) -> (i32, i32, i32) {
    %c0_i32 = arith.constant 0 : i32
    %c0_i32_0 = arith.constant 0 : i32
    %c0_i32_1 = arith.constant 0 : i32
    %c0_i32_2 = arith.constant 0 : i32
    return %c0_i32, %c0_i32_0, %c0_i32_1 : i32, i32, i32
  }
  func.func @transform_2(%arg0: i32) -> (i32, i32, i32) {
    %c0_i32 = arith.constant 0 : i32
    %c0_i32_0 = arith.constant 0 : i32
    %c0_i32_1 = arith.constant 0 : i32
    return %arg0, %c0_i32, %c0_i32_0 : i32, i32, i32
  }
}

</mosaic_0001>

<llo_original>
// kernel: tpu_custom_call.1
$region0: #{tpu_custom_call.1}
  #allocation0 [shape = 'u32[]', space=smem, size = 0x4, offset = 0x4, fixed_abs, tag = 'smem constant byte address 0x4 - core index']
  #allocation1 [shape = 'u32[144,128]{1,0:T(1,128)}', space=vmem, size = 0x12000, scoped, tag = 'internal scratch']
  %s0 = inlined_call_operand.vmem [shape: f32[8,4,4], index: 0, kind: input, shape index: {}]
  %s1 = inlined_call_operand.vmem [shape: f32[8,8,1], index: 1, kind: input, shape index: {}]
  %s2 = inlined_call_operand.vmem [shape: f32[8,8,3], index: 2, kind: output, shape index: {}]
  %s3 = sld [smem:[#allocation0]]
  $region18: #{tpu_custom_call.1} parent=0
    _
  %s5 = ssub.s32 1, %s3
  %s6 = scalar_select 0, %s5, %s3
  // Predicated region
  $region2: #{tpu_custom_call.1} parent=0 // pred_check
    _
  $region3: #{tpu_custom_call.1} parent=0 // pred_check_branch
    %8 = sbr.rel (0) target = $region5
  $region4: #{tpu_custom_call.1} parent=0 // pred_region
    _
  $region5: #{tpu_custom_call.1} parent=0 // pred_fallthru
    _
  // Predicated region
  $region6: #{tpu_custom_call.1} parent=0 // pred_check
    _
  $region7: #{tpu_custom_call.1} parent=0 // pred_check_branch
    %10 = sbr.rel (0) target = $region9
  $region8: #{tpu_custom_call.1} parent=0 // pred_region
    _
  $region9: #{tpu_custom_call.1} parent=0 // pred_fallthru
    _
  %v11 = vld [vmem:[%s0] sm:$0x1]
  %v12 = vld [vmem:[%s0 + $0x4] sm:$0x1]
  %v13 = vld [vmem:[%s0 + $0x8] sm:$0x1]
  %v14 = vld [vmem:[%s0 + $0xc] sm:$0x1]
  %v15 = vld [vmem:[%s0 + $0x10] sm:$0x1]
  %v16 = vld [vmem:[%s0 + $0x14] sm:$0x1]
  %v17 = vld [vmem:[%s0 + $0x18] sm:$0x1]
  %v18 = vld [vmem:[%s0 + $0x1c] sm:$0x1]
  %v19 = vld [vmem:[%s1] sm:$0xff]
  %21 = vset.pattern.permute.xlu0 0
  %22 = vperm.xlu0 %21, %v19
  %v23 = vpop.permute.xlu0 %22
  %v25 = vlaneseq
  %v26 = vshrl.u32 %v25, 7
  %v27 = vsub.s32 0, %v26
  %v28 = vrot.slane %v11, %v27
  %v29 = vlaneseq
  %v30 = vshrl.u32 %v29, 7
  %v31 = vsub.s32 0, %v30
  %v32 = vrot.slane %v12, %v31
  %v33 = vlaneseq
  %v34 = vshrl.u32 %v33, 7
  %v35 = vsub.s32 0, %v34
  %v36 = vrot.slane %v13, %v35
  %v37 = vlaneseq
  %v38 = vshrl.u32 %v37, 7
  %v39 = vsub.s32 0, %v38
  %v40 = vrot.slane %v14, %v39
  %v41 = vlaneseq
  %v42 = vshrl.u32 %v41, 7
  %v43 = vsub.s32 0, %v42
  %v44 = vrot.slane %v15, %v43
  %v45 = vlaneseq
  %v46 = vshrl.u32 %v45, 7
  %v47 = vsub.s32 0, %v46
  %v48 = vrot.slane %v16, %v47
  %v49 = vlaneseq
  %v50 = vshrl.u32 %v49, 7
  %v51 = vsub.s32 0, %v50
  %v52 = vrot.slane %v17, %v51
  %v53 = vlaneseq
  %v54 = vshrl.u32 %v53, 7
  %v55 = vsub.s32 0, %v54
  %v56 = vrot.slane %v18, %v55
  %v57 = vmul.f32 %v23, %v28
  %v58 = vmul.f32 %v23, %v32
  %v59 = vmul.f32 %v23, %v36
  %v60 = vmul.f32 %v23, %v40
  %v61 = vmul.f32 %v23, %v44
  %v62 = vmul.f32 %v23, %v48
  %v63 = vmul.f32 %v23, %v52
  %v64 = vmul.f32 %v23, %v56
  %v65 = vld [vmem:[%s0 + $0x1] sm:$0x1]
  %v66 = vld [vmem:[%s0 + $0x5] sm:$0x1]
  %v67 = vld [vmem:[%s0 + $0x9] sm:$0x1]
  %v68 = vld [vmem:[%s0 + $0xd] sm:$0x1]
  %v69 = vld [vmem:[%s0 + $0x11] sm:$0x1]
  %v70 = vld [vmem:[%s0 + $0x15] sm:$0x1]
  %v71 = vld [vmem:[%s0 + $0x19] sm:$0x1]
  %v72 = vld [vmem:[%s0 + $0x1d] sm:$0x1]
  %s73 = scalar_lea.vmem %s1, 8
  %v74 = vld [vmem:[%s73] sm:$0xff]
  %76 = vset.pattern.permute.xlu0 0
  %77 = vperm.xlu0 %76, %v74
  %v78 = vpop.permute.xlu0 %77
  %v80 = vlaneseq
  %v81 = vshrl.u32 %v80, 7
  %v82 = vsub.s32 0, %v81
  %v83 = vrot.slane %v65, %v82
  %v84 = vlaneseq
  %v85 = vshrl.u32 %v84, 7
  %v86 = vsub.s32 0, %v85
  %v87 = vrot.slane %v66, %v86
  %v88 = vlaneseq
  %v89 = vshrl.u32 %v88, 7
  %v90 = vsub.s32 0, %v89
  %v91 = vrot.slane %v67, %v90
  %v92 = vlaneseq
  %v93 = vshrl.u32 %v92, 7
  %v94 = vsub.s32 0, %v93
  %v95 = vrot.slane %v68, %v94
  %v96 = vlaneseq
  %v97 = vshrl.u32 %v96, 7
  %v98 = vsub.s32 0, %v97
  %v99 = vrot.slane %v69, %v98
  %v100 = vlaneseq
  %v101 = vshrl.u32 %v100, 7
  %v102 = vsub.s32 0, %v101
  %v103 = vrot.slane %v70, %v102
  %v104 = vlaneseq
  %v105 = vshrl.u32 %v104, 7
  %v106 = vsub.s32 0, %v105
  %v107 = vrot.slane %v71, %v106
  %v108 = vlaneseq
  %v109 = vshrl.u32 %v108, 7
  %v110 = vsub.s32 0, %v109
  %v111 = vrot.slane %v72, %v110
  %v112 = vmul.f32 %v78, %v83
  %v113 = vmul.f32 %v78, %v87
  %v114 = vmul.f32 %v78, %v91
  %v115 = vmul.f32 %v78, %v95
  %v116 = vmul.f32 %v78, %v99
  %v117 = vmul.f32 %v78, %v103
  %v118 = vmul.f32 %v78, %v107
  %v119 = vmul.f32 %v78, %v111
  %v120 = vadd.f32 %v57, %v112
  %v121 = vadd.f32 %v58, %v113
  %v122 = vadd.f32 %v59, %v114
  %v123 = vadd.f32 %v60, %v115
  %v124 = vadd.f32 %v61, %v116
  %v125 = vadd.f32 %v62, %v117
  %v126 = vadd.f32 %v63, %v118
  %v127 = vadd.f32 %v64, %v119
  %v128 = vld [vmem:[%s0 + $0x2] sm:$0x1]
  %v129 = vld [vmem:[%s0 + $0x6] sm:$0x1]
  %v130 = vld [vmem:[%s0 + $0xa] sm:$0x1]
  %v131 = vld [vmem:[%s0 + $0xe] sm:$0x1]
  %v132 = vld [vmem:[%s0 + $0x12] sm:$0x1]
  %v133 = vld [vmem:[%s0 + $0x16] sm:$0x1]
  %v134 = vld [vmem:[%s0 + $0x1a] sm:$0x1]
  %v135 = vld [vmem:[%s0 + $0x1e] sm:$0x1]
  %s136 = scalar_lea.vmem %s1, 16
  %v137 = vld [vmem:[%s136] sm:$0xff]
  %139 = vset.pattern.permute.xlu0 0
  %140 = vperm.xlu0 %139, %v137
  %v141 = vpop.permute.xlu0 %140
  %v143 = vlaneseq
  %v144 = vshrl.u32 %v143, 7
  %v145 = vsub.s32 0, %v144
  %v146 = vrot.slane %v128, %v145
  %v147 = vlaneseq
  %v148 = vshrl.u32 %v147, 7
  %v149 = vsub.s32 0, %v148
  %v150 = vrot.slane %v129, %v149
  %v151 = vlaneseq
  %v152 = vshrl.u32 %v151, 7
  %v153 = vsub.s32 0, %v152
  %v154 = vrot.slane %v130, %v153
  %v155 = vlaneseq
  %v156 = vshrl.u32 %v155, 7
  %v157 = vsub.s32 0, %v156
  %v158 = vrot.slane %v131, %v157
  %v159 = vlaneseq
  %v160 = vshrl.u32 %v159, 7
  %v161 = vsub.s32 0, %v160
  %v162 = vrot.slane %v132, %v161
  %v163 = vlaneseq
  %v164 = vshrl.u32 %v163, 7
  %v165 = vsub.s32 0, %v164
  %v166 = vrot.slane %v133, %v165
  %v167 = vlaneseq
  %v168 = vshrl.u32 %v167, 7
  %v169 = vsub.s32 0, %v168
  %v170 = vrot.slane %v134, %v169
  %v171 = vlaneseq
  %v172 = vshrl.u32 %v171, 7
  %v173 = vsub.s32 0, %v172
  %v174 = vrot.slane %v135, %v173
  %v175 = vmul.f32 %v141, %v146
  %v176 = vmul.f32 %v141, %v150
  %v177 = vmul.f32 %v141, %v154
  %v178 = vmul.f32 %v141, %v158
  %v179 = vmul.f32 %v141, %v162
  %v180 = vmul.f32 %v141, %v166
  %v181 = vmul.f32 %v141, %v170
  %v182 = vmul.f32 %v141, %v174
  %v183 = vadd.f32 %v120, %v175
  %v184 = vadd.f32 %v121, %v176
  %v185 = vadd.f32 %v122, %v177
  %v186 = vadd.f32 %v123, %v178
  %v187 = vadd.f32 %v124, %v179
  %v188 = vadd.f32 %v125, %v180
  %v189 = vadd.f32 %v126, %v181
  %v190 = vadd.f32 %v127, %v182
  %v191 = vld [vmem:[%s0 + $0x3] sm:$0x1]
  %v192 = vld [vmem:[%s0 + $0x7] sm:$0x1]
  %v193 = vld [vmem:[%s0 + $0xb] sm:$0x1]
  %v194 = vld [vmem:[%s0 + $0xf] sm:$0x1]
  %v195 = vld [vmem:[%s0 + $0x13] sm:$0x1]
  %v196 = vld [vmem:[%s0 + $0x17] sm:$0x1]
  %v197 = vld [vmem:[%s0 + $0x1b] sm:$0x1]
  %v198 = vld [vmem:[%s0 + $0x1f] sm:$0x1]
  %s199 = scalar_lea.vmem %s1, 24
  %v200 = vld [vmem:[%s199] sm:$0xff]
  %202 = vset.pattern.permute.xlu0 0
  %203 = vperm.xlu0 %202, %v200
  %v204 = vpop.permute.xlu0 %203
  %v206 = vlaneseq
  %v207 = vshrl.u32 %v206, 7
  %v208 = vsub.s32 0, %v207
  %v209 = vrot.slane %v191, %v208
  %v210 = vlaneseq
  %v211 = vshrl.u32 %v210, 7
  %v212 = vsub.s32 0, %v211
  %v213 = vrot.slane %v192, %v212
  %v214 = vlaneseq
  %v215 = vshrl.u32 %v214, 7
  %v216 = vsub.s32 0, %v215
  %v217 = vrot.slane %v193, %v216
  %v218 = vlaneseq
  %v219 = vshrl.u32 %v218, 7
  %v220 = vsub.s32 0, %v219
  %v221 = vrot.slane %v194, %v220
  %v222 = vlaneseq
  %v223 = vshrl.u32 %v222, 7
  %v224 = vsub.s32 0, %v223
  %v225 = vrot.slane %v195, %v224
  %v226 = vlaneseq
  %v227 = vshrl.u32 %v226, 7
  %v228 = vsub.s32 0, %v227
  %v229 = vrot.slane %v196, %v228
  %v230 = vlaneseq
  %v231 = vshrl.u32 %v230, 7
  %v232 = vsub.s32 0, %v231
  %v233 = vrot.slane %v197, %v232
  %v234 = vlaneseq
  %v235 = vshrl.u32 %v234, 7
  %v236 = vsub.s32 0, %v235
  %v237 = vrot.slane %v198, %v236
  %v238 = vmul.f32 %v204, %v209
  %v239 = vmul.f32 %v204, %v213
  %v240 = vmul.f32 %v204, %v217
  %v241 = vmul.f32 %v204, %v221
  %v242 = vmul.f32 %v204, %v225
  %v243 = vmul.f32 %v204, %v229
  %v244 = vmul.f32 %v204, %v233
  %v245 = vmul.f32 %v204, %v237
  %v246 = vadd.f32 %v183, %v238
  %v247 = vadd.f32 %v184, %v239
  %v248 = vadd.f32 %v185, %v240
  %v249 = vadd.f32 %v186, %v241
  %v250 = vadd.f32 %v187, %v242
  %v251 = vadd.f32 %v188, %v243
  %v252 = vadd.f32 %v189, %v244
  %v253 = vadd.f32 %v190, %v245
  %s254 = scalar_lea.vmem %s1, 32
  %v255 = vld [vmem:[%s254] sm:$0xff]
  %257 = vset.pattern.permute.xlu0 0
  %258 = vperm.xlu0 %257, %v255
  %v259 = vpop.permute.xlu0 %258
  %v261 = vmul.f32 %v259, %v28
  %v262 = vmul.f32 %v259, %v32
  %v263 = vmul.f32 %v259, %v36
  %v264 = vmul.f32 %v259, %v40
  %v265 = vmul.f32 %v259, %v44
  %v266 = vmul.f32 %v259, %v48
  %v267 = vmul.f32 %v259, %v52
  %v268 = vmul.f32 %v259, %v56
  %277 = vrot.lane.b32.xlu0 %v261, 127
  %v278 = vpop.permute.xlu0 %277
  %279 = vrot.lane.b32.xlu0 %v262, 127
  %v280 = vpop.permute.xlu0 %279
  %281 = vrot.lane.b32.xlu0 %v263, 127
  %v282 = vpop.permute.xlu0 %281
  %283 = vrot.lane.b32.xlu0 %v264, 127
  %v284 = vpop.permute.xlu0 %283
  %285 = vrot.lane.b32.xlu0 %v265, 127
  %v286 = vpop.permute.xlu0 %285
  %287 = vrot.lane.b32.xlu0 %v266, 127
  %v288 = vpop.permute.xlu0 %287
  %289 = vrot.lane.b32.xlu0 %v267, 127
  %v290 = vpop.permute.xlu0 %289
  %291 = vrot.lane.b32.xlu0 %v268, 127
  %v292 = vpop.permute.xlu0 %291
  %v301 = vadd.f32 %v246, %v278
  %v302 = vadd.f32 %v247, %v280
  %v303 = vadd.f32 %v248, %v282
  %v304 = vadd.f32 %v249, %v284
  %v305 = vadd.f32 %v250, %v286
  %v306 = vadd.f32 %v251, %v288
  %v307 = vadd.f32 %v252, %v290
  %v308 = vadd.f32 %v253, %v292
  %s309 = scalar_lea.vmem %s1, 40
  %v310 = vld [vmem:[%s309] sm:$0xff]
  %312 = vset.pattern.permute.xlu0 0
  %313 = vperm.xlu0 %312, %v310
  %v314 = vpop.permute.xlu0 %313
  %v316 = vmul.f32 %v314, %v83
  %v317 = vmul.f32 %v314, %v87
  %v318 = vmul.f32 %v314, %v91
  %v319 = vmul.f32 %v314, %v95
  %v320 = vmul.f32 %v314, %v99
  %v321 = vmul.f32 %v314, %v103
  %v322 = vmul.f32 %v314, %v107
  %v323 = vmul.f32 %v314, %v111
  %332 = vrot.lane.b32.xlu0 %v316, 127
  %v333 = vpop.permute.xlu0 %332
  %334 = vrot.lane.b32.xlu0 %v317, 127
  %v335 = vpop.permute.xlu0 %334
  %336 = vrot.lane.b32.xlu0 %v318, 127
  %v337 = vpop.permute.xlu0 %336
  %338 = vrot.lane.b32.xlu0 %v319, 127
  %v339 = vpop.permute.xlu0 %338
  %340 = vrot.lane.b32.xlu0 %v320, 127
  %v341 = vpop.permute.xlu0 %340
  %342 = vrot.lane.b32.xlu0 %v321, 127
  %v343 = vpop.permute.xlu0 %342
  %344 = vrot.lane.b32.xlu0 %v322, 127
  %v345 = vpop.permute.xlu0 %344
  %346 = vrot.lane.b32.xlu0 %v323, 127
  %v347 = vpop.permute.xlu0 %346
  %v356 = vadd.f32 %v301, %v333
  %v357 = vadd.f32 %v302, %v335
  %v358 = vadd.f32 %v303, %v337
  %v359 = vadd.f32 %v304, %v339
  %v360 = vadd.f32 %v305, %v341
  %v361 = vadd.f32 %v306, %v343
  %v362 = vadd.f32 %v307, %v345
  %v363 = vadd.f32 %v308, %v347
  %s364 = scalar_lea.vmem %s1, 48
  %v365 = vld [vmem:[%s364] sm:$0xff]
  %367 = vset.pattern.permute.xlu0 0
  %368 = vperm.xlu0 %367, %v365
  %v369 = vpop.permute.xlu0 %368
  %v371 = vmul.f32 %v369, %v146
  %v372 = vmul.f32 %v369, %v150
  %v373 = vmul.f32 %v369, %v154
  %v374 = vmul.f32 %v369, %v158
  %v375 = vmul.f32 %v369, %v162
  %v376 = vmul.f32 %v369, %v166
  %v377 = vmul.f32 %v369, %v170
  %v378 = vmul.f32 %v369, %v174
  %387 = vrot.lane.b32.xlu0 %v371, 127
  %v388 = vpop.permute.xlu0 %387
  %389 = vrot.lane.b32.xlu0 %v372, 127
  %v390 = vpop.permute.xlu0 %389
  %391 = vrot.lane.b32.xlu0 %v373, 127
  %v392 = vpop.permute.xlu0 %391
  %393 = vrot.lane.b32.xlu0 %v374, 127
  %v394 = vpop.permute.xlu0 %393
  %395 = vrot.lane.b32.xlu0 %v375, 127
  %v396 = vpop.permute.xlu0 %395
  %397 = vrot.lane.b32.xlu0 %v376, 127
  %v398 = vpop.permute.xlu0 %397
  %399 = vrot.lane.b32.xlu0 %v377, 127
  %v400 = vpop.permute.xlu0 %399
  %401 = vrot.lane.b32.xlu0 %v378, 127
  %v402 = vpop.permute.xlu0 %401
  %v411 = vadd.f32 %v356, %v388
  %v412 = vadd.f32 %v357, %v390
  %v413 = vadd.f32 %v358, %v392
  %v414 = vadd.f32 %v359, %v394
  %v415 = vadd.f32 %v360, %v396
  %v416 = vadd.f32 %v361, %v398
  %v417 = vadd.f32 %v362, %v400
  %v418 = vadd.f32 %v363, %v402
  %s419 = scalar_lea.vmem %s1, 56
  %v420 = vld [vmem:[%s419] sm:$0xff]
  %422 = vset.pattern.permute.xlu0 0
  %423 = vperm.xlu0 %422, %v420
  %v424 = vpop.permute.xlu0 %423
  %v426 = vmul.f32 %v424, %v209
  %v427 = vmul.f32 %v424, %v213
  %v428 = vmul.f32 %v424, %v217
  %v429 = vmul.f32 %v424, %v221
  %v430 = vmul.f32 %v424, %v225
  %v431 = vmul.f32 %v424, %v229
  %v432 = vmul.f32 %v424, %v233
  %v433 = vmul.f32 %v424, %v237
  %442 = vrot.lane.b32.xlu0 %v426, 127
  %v443 = vpop.permute.xlu0 %442
  %444 = vrot.lane.b32.xlu0 %v427, 127
  %v445 = vpop.permute.xlu0 %444
  %446 = vrot.lane.b32.xlu0 %v428, 127
  %v447 = vpop.permute.xlu0 %446
  %448 = vrot.lane.b32.xlu0 %v429, 127
  %v449 = vpop.permute.xlu0 %448
  %450 = vrot.lane.b32.xlu0 %v430, 127
  %v451 = vpop.permute.xlu0 %450
  %452 = vrot.lane.b32.xlu0 %v431, 127
  %v453 = vpop.permute.xlu0 %452
  %454 = vrot.lane.b32.xlu0 %v432, 127
  %v455 = vpop.permute.xlu0 %454
  %456 = vrot.lane.b32.xlu0 %v433, 127
  %v457 = vpop.permute.xlu0 %456
  %v466 = vadd.f32 %v411, %v443
  %v467 = vadd.f32 %v412, %v445
  %v468 = vadd.f32 %v413, %v447
  %v469 = vadd.f32 %v414, %v449
  %v470 = vadd.f32 %v415, %v451
  %v471 = vadd.f32 %v416, %v453
  %v472 = vadd.f32 %v417, %v455
  %v473 = vadd.f32 %v418, %v457
  %vm474 = vcmask 23552
  %475 = vst.msk [vmem:[%s2] sm:$0xff] %vm474, %v466
  %476 = vst.msk [vmem:[%s2 + $0x8] sm:$0xff] %vm474, %v467
  %477 = vst.msk [vmem:[%s2 + $0x10] sm:$0xff] %vm474, %v468
  %478 = vst.msk [vmem:[%s2 + $0x18] sm:$0xff] %vm474, %v469
  %479 = vst.msk [vmem:[%s2 + $0x20] sm:$0xff] %vm474, %v470
  %480 = vst.msk [vmem:[%s2 + $0x28] sm:$0xff] %vm474, %v471
  %481 = vst.msk [vmem:[%s2 + $0x30] sm:$0xff] %vm474, %v472
  %482 = vst.msk [vmem:[%s2 + $0x38] sm:$0xff] %vm474, %v473
  // Predicated region
  $region10: #{tpu_custom_call.1} parent=0 // pred_check
    _
  $region11: #{tpu_custom_call.1} parent=0 // pred_check_branch
    %484 = sbr.rel (0) target = $region13
  $region12: #{tpu_custom_call.1} parent=0 // pred_region
    _
  $region13: #{tpu_custom_call.1} parent=0 // pred_fallthru
    _
  // Predicated region
  $region14: #{tpu_custom_call.1} parent=0 // pred_check
    _
  $region15: #{tpu_custom_call.1} parent=0 // pred_check_branch
    %486 = sbr.rel (0) target = $region17
  $region16: #{tpu_custom_call.1} parent=0 // pred_region
    _
  $region17: #{tpu_custom_call.1} parent=0 // pred_fallthru
    _

</llo_original>
